<compile_context>
chip_gen: v5e
topology: v5e:2x2
jax: 0.10.0
libtpu: 0.0.40
codegen_flags: <defaults>
</compile_context>

<pallas_src>
import jax
import jax.numpy as jnp
from jax.experimental import pallas as pl
from jax.experimental.pallas import tpu as pltpu


def _spatial_loss_kernel(pred_ref, target_ref, out_ref, acc_ref):
    t = pl.program_id(1)
    _, C, TH, W = pred_ref.shape
    Hp, _ = acc_ref.shape
    THp = TH // 4
    f32 = jnp.float32

    # ----------------- streaming phase (HBM-bandwidth-bound) -----------------
    diff = target_ref[0].astype(f32) - pred_ref[0].astype(f32)       # (C, TH, W)
    s = jnp.sum(diff, axis=0)                                        # (TH, W)
    rows = [jnp.sum(s[4 * g:4 * g + 4], axis=0, keepdims=True)       # (1, W)
            for g in range(THp)]
    hpool = jnp.concatenate(rows, axis=0) if THp > 1 else rows[0]    # (THp, W)
    acc_ref[pl.ds(t * THp, THp), :] = hpool

    # ----------------- finalize: once per batch element ----------------------
    @pl.when(t == pl.num_programs(1) - 1)
    def _finalize():
        a = acc_ref[...]                                             # (Hp, W)

        def shift_left(x, k):   # y[i, j] = x[i, j + k], zero-filled right edge
            return jnp.concatenate([x[:, k:], jnp.zeros((Hp, k), f32)], axis=1)

        # horizontal 4-group sums -> valid on lanes with j % 4 == 0
        csum = a + shift_left(a, 1) + shift_left(a, 2) + shift_left(a, 3)
        col = jax.lax.broadcasted_iota(jnp.int32, (Hp, W), 1)
        scale = 1.0 / (C * 16.0)      # channel mean (1/C) * 4x4 avg pool (1/16)
        d = jnp.where((col & 3) == 0, csum, 0.0) * scale   # sparse pooled diff map

        zrow = jnp.zeros((1, W), f32)
        zcol = jnp.zeros((Hp, 4), f32)
        # pooled-grid neighbours live 4 lanes / 1 sublane away; zero-padded
        # borders reproduce F.conv2d(..., padding=1) exactly.
        nb_l = (jnp.concatenate([zcol, d[:, :W - 4]], axis=1)
                if W > 4 else jnp.zeros_like(d))
        nb_r = (jnp.concatenate([d[:, 4:], zcol], axis=1)
                if W > 4 else jnp.zeros_like(d))
        nb_u = (jnp.concatenate([zrow, d[:Hp - 1, :]], axis=0)
                if Hp > 1 else jnp.zeros_like(d))
        nb_d = (jnp.concatenate([d[1:, :], zrow], axis=0)
                if Hp > 1 else jnp.zeros_like(d))

        tot = ((d - nb_l) ** 2 + (d - nb_r) ** 2 +
               (d - nb_u) ** 2 + (d - nb_d) ** 2)
        # lanes with j % 4 != 0 contribute exactly zero (d and neighbours are 0)
        out_ref[...] = jnp.full(out_ref.shape, jnp.sum(tot), dtype=f32)


def _choose_tile_h(H, C, W, itemsize, vmem_budget_bytes=8 * 1024 * 1024):
    """Largest tile height that divides H, is a multiple of 4, satisfies the
    TPU sublane constraint (multiple of 8 or == H), and keeps the
    double-buffered pred+target blocks within a conservative VMEM budget."""
    cands = [th for th in range(4, H + 1, 4)
             if H % th == 0 and (th % 8 == 0 or th == H)]
    assert cands, "H must be a multiple of 4"
    fitting = [th for th in cands
               if 4 * C * th * W * itemsize <= vmem_budget_bytes]
    return max(fitting) if fitting else min(cands)


def spatial_loss(pred, target, loss_weight=1.0, tile_h=None):
    """Pallas implementation of SpatialLoss.forward. pred/target: (N, C, H, W)."""
    assert pred.ndim == 4 and pred.shape == target.shape
    N, C, H, W = pred.shape
    # TODO(synk): AvgPool2d(4) floor behaviour when H or W is not a multiple of 4.
    assert H % 4 == 0 and W % 4 == 0, "H and W must be multiples of 4"
    Hp, Wp = H // 4, W // 4

    if tile_h is None:
        tile_h = _choose_tile_h(H, C, W, jnp.dtype(pred.dtype).itemsize)
    assert H % tile_h == 0 and tile_h % 4 == 0
    assert tile_h % 8 == 0 or tile_h == H
    n_h_tiles = H // tile_h

    partial = pl.pallas_call(
        _spatial_loss_kernel,
        out_shape=jax.ShapeDtypeStruct((N, 8, 128), jnp.float32),
        grid_spec=pltpu.PrefetchScalarGridSpec(
            num_scalar_prefetch=0,
            grid=(N, n_h_tiles),
            in_specs=[
                pl.BlockSpec((1, C, tile_h, W), lambda b, t: (b, 0, t, 0)),
                pl.BlockSpec((1, C, tile_h, W), lambda b, t: (b, 0, t, 0)),
            ],
            out_specs=pl.BlockSpec((1, 8, 128), lambda b, t: (b, 0, 0)),
            scratch_shapes=[pltpu.VMEM((Hp, W), jnp.float32)],
        ),
        compiler_params=pltpu.CompilerParams(
            dimension_semantics=("parallel", "arbitrary")),
    )(pred, target)

    per_batch = partial[:, 0, 0]                       # (N,) per-sample sums
    return jnp.sum(per_batch) * (loss_weight / (N * Hp * Wp))


def spatial_loss_ref(pred, target, loss_weight=1.0):
    """Pure-JAX reference mirroring the PyTorch module."""
    tmean = jnp.mean(target.astype(jnp.float32), axis=1, keepdims=True)
    pmean = jnp.mean(pred.astype(jnp.float32), axis=1, keepdims=True)

    def pool4(x):
        n, c, h, w = x.shape
        return x.reshape(n, c, h // 4, 4, w // 4, 4).mean(axis=(3, 5))

    tpool, ppool = pool4(tmean), pool4(pmean)

    def dconv(x, dy, dx):
        # cross-correlation with the Zero-DCE difference kernels, zero padding:
        # out[i, j] = x[i, j] - x[i + dy, j + dx]
        n, c, h, w = x.shape
        xpad = jnp.pad(x, ((0, 0), (0, 0), (1, 1), (1, 1)))
        return x - xpad[:, :, 1 + dy:1 + dy + h, 1 + dx:1 + dx + w]

    left = (dconv(tpool, 0, -1) - dconv(ppool, 0, -1)) ** 2
    right = (dconv(tpool, 0, 1) - dconv(ppool, 0, 1)) ** 2
    up = (dconv(tpool, -1, 0) - dconv(ppool, -1, 0)) ** 2
    down = (dconv(tpool, 1, 0) - dconv(ppool, 1, 0)) ** 2
    return jnp.mean(left + right + up + down) * loss_weight


if __name__ == "__main__":
    key = jax.random.PRNGKey(0)
    k1, k2, k3, k4 = jax.random.split(key, 4)
    ok = True

    # Small shape consistent with the module: (N, C, H, W) = (2, 4, 16, 16).
    pred = jax.random.uniform(k1, (2, 4, 16, 16), dtype=jnp.float32)
    target = jax.random.uniform(k2, (2, 4, 16, 16), dtype=jnp.float32)
    out = jax.block_until_ready(spatial_loss(pred, target, loss_weight=0.75))
    ref = spatial_loss_ref(pred, target, loss_weight=0.75)
    if not jnp.allclose(out, ref, rtol=1e-4, atol=1e-6):
        ok = False
        print(f"mismatch (single-tile case): kernel={out} ref={ref}")

    # Second shape exercising the multi-tile spatial pipeline (forced tile_h=8).
    pred2 = jax.random.uniform(k3, (2, 3, 32, 256), dtype=jnp.float32)
    target2 = jax.random.uniform(k4, (2, 3, 32, 256), dtype=jnp.float32)
    out2 = jax.block_until_ready(
        spatial_loss(pred2, target2, loss_weight=1.0, tile_h=8))
    ref2 = spatial_loss_ref(pred2, target2, loss_weight=1.0)
    if not jnp.allclose(out2, ref2, rtol=1e-4, atol=1e-6):
        ok = False
        print(f"mismatch (multi-tile case): kernel={out2} ref={ref2}")

    if ok:
        print("KERNEL_OK")
</pallas_src>

<mosaic_0001>
module attributes {stable_mosaic.version = 11 : i64} {
  func.func @_spatial_loss_kernel(%arg0: i32, %arg1: i32, %arg2: memref<1x4x16x16xf32, #tpu.memory_space<vmem>>, %arg3: memref<1x4x16x16xf32, #tpu.memory_space<vmem>>, %arg4: memref<1x8x128xf32, #tpu.memory_space<vmem>>, %arg5: memref<4x16xf32, #tpu.memory_space<vmem>>) attributes {dimension_semantics = [#tpu.dimension_semantics<parallel>, #tpu.dimension_semantics<arbitrary>], iteration_bounds = array<i64: 2, 1>, scalar_prefetch = 0 : i64, scratch_operands = 1 : i64, tpu.core_type = #tpu.core_type<tc>, window_params = [{transform_indices = @transform_0, window_bounds = array<i64: 1, 4, 16, 16>}, {transform_indices = @transform_1, window_bounds = array<i64: 1, 4, 16, 16>}, {transform_indices = @transform_2, window_bounds = array<i64: 1, 8, 128>}]} {
    %c0 = arith.constant 0 : index
    %c0_0 = arith.constant 0 : index
    %c0_1 = arith.constant 0 : index
    %c0_2 = arith.constant 0 : index
    %0 = vector.load %arg3[%c0, %c0_0, %c0_1, %c0_2] : memref<1x4x16x16xf32, #tpu.memory_space<vmem>>, vector<1x4x16x16xf32>
    %1 = vector.shape_cast %0 : vector<1x4x16x16xf32> to vector<4x16x16xf32>
    %c0_3 = arith.constant 0 : index
    %c0_4 = arith.constant 0 : index
    %c0_5 = arith.constant 0 : index
    %c0_6 = arith.constant 0 : index
    %2 = vector.load %arg2[%c0_3, %c0_4, %c0_5, %c0_6] : memref<1x4x16x16xf32, #tpu.memory_space<vmem>>, vector<1x4x16x16xf32>
    %3 = vector.shape_cast %2 : vector<1x4x16x16xf32> to vector<4x16x16xf32>
    %4 = arith.subf %1, %3 : vector<4x16x16xf32>
    %cst = arith.constant dense<0.000000e+00> : vector<16x16xf32>
    %5 = vector.multi_reduction <add>, %4, %cst [0] : vector<4x16x16xf32> to vector<16x16xf32>
    %6 = vector.extract_strided_slice %5 {offsets = [0, 0], sizes = [4, 16], strides = [1, 1]} : vector<16x16xf32> to vector<4x16xf32>
    %cst_7 = arith.constant dense<0.000000e+00> : vector<16xf32>
    %7 = vector.multi_reduction <add>, %6, %cst_7 [0] : vector<4x16xf32> to vector<16xf32>
    %8 = vector.shape_cast %7 : vector<16xf32> to vector<1x16xf32>
    %9 = vector.extract_strided_slice %5 {offsets = [4, 0], sizes = [4, 16], strides = [1, 1]} : vector<16x16xf32> to vector<4x16xf32>
    %cst_8 = arith.constant dense<0.000000e+00> : vector<16xf32>
    %10 = vector.multi_reduction <add>, %9, %cst_8 [0] : vector<4x16xf32> to vector<16xf32>
    %11 = vector.shape_cast %10 : vector<16xf32> to vector<1x16xf32>
    %12 = vector.extract_strided_slice %5 {offsets = [8, 0], sizes = [4, 16], strides = [1, 1]} : vector<16x16xf32> to vector<4x16xf32>
    %cst_9 = arith.constant dense<0.000000e+00> : vector<16xf32>
    %13 = vector.multi_reduction <add>, %12, %cst_9 [0] : vector<4x16xf32> to vector<16xf32>
    %14 = vector.shape_cast %13 : vector<16xf32> to vector<1x16xf32>
    %15 = vector.extract_strided_slice %5 {offsets = [12, 0], sizes = [4, 16], strides = [1, 1]} : vector<16x16xf32> to vector<4x16xf32>
    %cst_10 = arith.constant dense<0.000000e+00> : vector<16xf32>
    %16 = vector.multi_reduction <add>, %15, %cst_10 [0] : vector<4x16xf32> to vector<16xf32>
    %17 = vector.shape_cast %16 : vector<16xf32> to vector<1x16xf32>
    %18 = tpu.concatenate %8, %11, %14, %17 in 0 : vector<1x16xf32>, vector<1x16xf32>, vector<1x16xf32>, vector<1x16xf32> -> vector<4x16xf32>
    %c4_i32 = arith.constant 4 : i32
    %19 = arith.muli %arg1, %c4_i32 : i32
    %20 = arith.index_cast %19 : i32 to index
    %c0_11 = arith.constant 0 : index
    %21 = vector.load %arg5[%20, %c0_11] : memref<4x16xf32, #tpu.memory_space<vmem>>, vector<4x16xf32>
    tpu.vector_store %arg5[%20, %c0_11], %18 {strides = array<i32>} : memref<4x16xf32, #tpu.memory_space<vmem>>, vector<4x16xf32>,
    %c0_i32 = arith.constant 0 : i32
    %22 = arith.cmpi eq, %arg1, %c0_i32 : i32
    %23 = arith.extui %22 : i1 to i32
    %c0_i32_12 = arith.constant 0 : i32
    %24 = arith.cmpi ne, %23, %c0_i32_12 : i32
    scf.if %24 {
      %c0_13 = arith.constant 0 : index
      %c0_14 = arith.constant 0 : index
      %25 = vector.load %arg5[%c0_13, %c0_14] : memref<4x16xf32, #tpu.memory_space<vmem>>, vector<4x16xf32>
      %26 = vector.extract_strided_slice %25 {offsets = [0, 1], sizes = [4, 15], strides = [1, 1]} : vector<4x16xf32> to vector<4x15xf32>
      %cst_15 = arith.constant 0.000000e+00 : f32
      %27 = vector.broadcast %cst_15 : f32 to vector<4x1xf32>
      %28 = tpu.concatenate %26, %27 in 1 : vector<4x15xf32>, vector<4x1xf32> -> vector<4x16xf32>
      %29 = arith.addf %25, %28 : vector<4x16xf32>
      %30 = vector.extract_strided_slice %25 {offsets = [0, 2], sizes = [4, 14], strides = [1, 1]} : vector<4x16xf32> to vector<4x14xf32>
      %cst_16 = arith.constant 0.000000e+00 : f32
      %31 = vector.broadcast %cst_16 : f32 to vector<4x2xf32>
      %32 = tpu.concatenate %30, %31 in 1 : vector<4x14xf32>, vector<4x2xf32> -> vector<4x16xf32>
      %33 = arith.addf %29, %32 : vector<4x16xf32>
      %34 = vector.extract_strided_slice %25 {offsets = [0, 3], sizes = [4, 13], strides = [1, 1]} : vector<4x16xf32> to vector<4x13xf32>
      %cst_17 = arith.constant 0.000000e+00 : f32
      %35 = vector.broadcast %cst_17 : f32 to vector<4x3xf32>
      %36 = tpu.concatenate %34, %35 in 1 : vector<4x13xf32>, vector<4x3xf32> -> vector<4x16xf32>
      %37 = arith.addf %33, %36 : vector<4x16xf32>
      %38 = tpu.iota {dimensions = array<i32: 1>} : vector<4x16xi32>
      %c3_i32 = arith.constant 3 : i32
      %39 = vector.broadcast %c3_i32 : i32 to vector<4x16xi32>
      %40 = arith.andi %38, %39 : vector<4x16xi32>
      %c0_i32_18 = arith.constant 0 : i32
      %41 = vector.broadcast %c0_i32_18 : i32 to vector<4x16xi32>
      %42 = arith.cmpi eq, %40, %41 : vector<4x16xi32>
      %cst_19 = arith.constant 0.000000e+00 : f32
      %43 = vector.broadcast %cst_19 : f32 to vector<4x16xf32>
      %44 = arith.select %42, %37, %43 : vector<4x16xi1>, vector<4x16xf32>
      %cst_20 = arith.constant 1.562500e-02 : f32
      %45 = vector.broadcast %cst_20 : f32 to vector<4x16xf32>
      %46 = arith.mulf %44, %45 : vector<4x16xf32>
      %cst_21 = arith.constant 0.000000e+00 : f32
      %47 = vector.broadcast %cst_21 : f32 to vector<1x16xf32>
      %cst_22 = arith.constant 0.000000e+00 : f32
      %48 = vector.broadcast %cst_22 : f32 to vector<4x4xf32>
      %49 = vector.extract_strided_slice %46 {offsets = [0, 0], sizes = [4, 12], strides = [1, 1]} : vector<4x16xf32> to vector<4x12xf32>
      %50 = tpu.concatenate %48, %49 in 1 : vector<4x4xf32>, vector<4x12xf32> -> vector<4x16xf32>
      %51 = vector.extract_strided_slice %46 {offsets = [0, 4], sizes = [4, 12], strides = [1, 1]} : vector<4x16xf32> to vector<4x12xf32>
      %52 = tpu.concatenate %51, %48 in 1 : vector<4x12xf32>, vector<4x4xf32> -> vector<4x16xf32>
      %53 = vector.extract_strided_slice %46 {offsets = [0, 0], sizes = [3, 16], strides = [1, 1]} : vector<4x16xf32> to vector<3x16xf32>
      %54 = tpu.concatenate %47, %53 in 0 : vector<1x16xf32>, vector<3x16xf32> -> vector<4x16xf32>
      %55 = vector.extract_strided_slice %46 {offsets = [1, 0], sizes = [3, 16], strides = [1, 1]} : vector<4x16xf32> to vector<3x16xf32>
      %56 = tpu.concatenate %55, %47 in 0 : vector<3x16xf32>, vector<1x16xf32> -> vector<4x16xf32>
      %57 = arith.subf %46, %50 : vector<4x16xf32>
      %58 = arith.mulf %57, %57 : vector<4x16xf32>
      %59 = arith.subf %46, %52 : vector<4x16xf32>
      %60 = arith.mulf %59, %59 : vector<4x16xf32>
      %61 = arith.addf %58, %60 : vector<4x16xf32>
      %62 = arith.subf %46, %54 : vector<4x16xf32>
      %63 = arith.mulf %62, %62 : vector<4x16xf32>
      %64 = arith.addf %61, %63 : vector<4x16xf32>
      %65 = arith.subf %46, %56 : vector<4x16xf32>
      %66 = arith.mulf %65, %65 : vector<4x16xf32>
      %67 = arith.addf %64, %66 : vector<4x16xf32>
      %68 = vector.shape_cast %67 : vector<4x16xf32> to vector<1x4x16xf32>
      %cst_23 = arith.constant dense<0.000000e+00> : vector<1xf32>
      %69 = vector.multi_reduction <add>, %68, %cst_23 [1, 2] : vector<1x4x16xf32> to vector<1xf32>
      %70 = vector.shape_cast %69 : vector<1xf32> to vector<1x1x1xf32>
      %71 = vector.extract %70[0, 0, 0] : f32 from vector<1x1x1xf32>
      %72 = vector.broadcast %71 : f32 to vector<1x8x128xf32>
      %c0_24 = arith.constant 0 : index
      %c0_25 = arith.constant 0 : index
      %c0_26 = arith.constant 0 : index
      %73 = vector.load %arg4[%c0_24, %c0_25, %c0_26] : memref<1x8x128xf32, #tpu.memory_space<vmem>>, vector<1x8x128xf32>
      tpu.vector_store %arg4[%c0_24, %c0_25, %c0_26], %72 {strides = array<i32>} : memref<1x8x128xf32, #tpu.memory_space<vmem>>, vector<1x8x128xf32>,
    } else {
    }
    return
  }
  func.func @transform_0(%arg0: i32, %arg1: i32) -> (i32, i32, i32, i32) {
    %c0_i32 = arith.constant 0 : i32
    %c0_i32_0 = arith.constant 0 : i32
    %c0_i32_1 = arith.constant 0 : i32
    return %arg0, %c0_i32, %arg1, %c0_i32_0 : i32, i32, i32, i32
  }
  func.func @transform_1(%arg0: i32, %arg1: i32) -> (i32, i32, i32, i32) {
    %c0_i32 = arith.constant 0 : i32
    %c0_i32_0 = arith.constant 0 : i32
    %c0_i32_1 = arith.constant 0 : i32
    return %arg0, %c0_i32, %arg1, %c0_i32_0 : i32, i32, i32, i32
  }
  func.func @transform_2(%arg0: i32, %arg1: i32) -> (i32, i32, i32) {
    %c0_i32 = arith.constant 0 : i32
    %c0_i32_0 = arith.constant 0 : i32
    %c0_i32_1 = arith.constant 0 : i32
    return %arg0, %c0_i32, %c0_i32_0 : i32, i32, i32
  }
}

</mosaic_0001>

<llo_original>
// kernel: tpu_custom_call.1
$region0: #{tpu_custom_call.1}
  #allocation0 [shape = 'u32[]', space=smem, size = 0x4, offset = 0x4, fixed_abs, tag = 'smem constant byte address 0x4 - core index']
  #allocation1 [shape = 'u32[72,128]{1,0:T(1,128)}', space=vmem, size = 0x9000, scoped, tag = 'internal scratch']
  #allocation2 [shape = 'f32[4,16]{1,0:T(4,128)}', space=vmem, size = 0x800, scoped, tag = 'scratch operand']
  %s0 = inlined_call_operand.hbm [shape: f32[2,4,16,16], index: 0, kind: input, shape index: {}]
  %s1 = inlined_call_operand.hbm [shape: f32[2,4,16,16], index: 1, kind: input, shape index: {}]
  %s2 = inlined_call_operand.hbm [shape: f32[2,8,128], index: 2, kind: output, shape index: {}]
  %s3 = sld [smem:[#allocation0]]
  $region53: #{tpu_custom_call.1} parent=0
    _
  %s5 = ssub.s32 1, %s3
  %s6 = scalar_select 0, %s5, %s3
  $region1: #{tpu_custom_call.1} parent=0
    #allocation3 [shape = 'u8[65536]{0}', space=vmem, size = 0x10000, scoped, tag = 'input window, operand 0']
    #allocation4 [shape = 's32[2]{0}', space=sflag, size = 0x8, scoped, tag = 'scoped memory for tpu_custom_call.1']
    #allocation5 [shape = 's32[2]{0}', space=sflag, size = 0x8, scoped, tag = 'scoped memory for tpu_custom_call.1']
    #allocation6 [shape = 'u8[65536]{0}', space=vmem, size = 0x10000, scoped, tag = 'input window, operand 1']
    #allocation7 [shape = 's32[2]{0}', space=sflag, size = 0x8, scoped, tag = 'scoped memory for tpu_custom_call.1']
    #allocation8 [shape = 'u8[8192]{0}', space=vmem, size = 0x2000, scoped, tag = 'output window, operand 0']
    %7 = vsyncpa [#allocation4], 0
    %s8 = scalar_lea.sflag [#allocation4], 1
    %9 = vsyncpa %s8, 0
    %10 = vsyncpa [#allocation7], 0
    %s11 = scalar_lea.sflag [#allocation7], 1
    %12 = vsyncpa %s11, 0
    %13 = vsyncpa [#allocation5], 0
    %s14 = scalar_lea.sflag [#allocation5], 1
    %15 = vsyncpa %s14, 0
    loop: start=0, step=1, limit=4
    $region2: #{tpu_custom_call.1} parent=1 // loop_pre_header
      _
    $region3: #{tpu_custom_call.1} parent=1 // loop_header
      %s17 = sphi 0, %s21
      %p18 = scmp.ge.s32.totalorder %s17, 4
      %s24 = sphi 0, %s36
      %s25 = sphi 0, %s32
      %s26 = sphi 0, %s24
      %s27 = sphi 0, %s25
      %s28 = sphi 0, %s26
      %s29 = sphi 0, %s27
      %s41 = sphi 0, %s43
      %s44 = sphi 0, %s41
      %s45 = sphi 0, %s44
      %s61 = sphi 0, %s45
      %s69 = sphi 0, %s71
      %s72 = sphi 0, %s69
      %s73 = sphi 0, %s72
      %s89 = sphi 0, %s73
      %s95 = sphi 0, %s97
      %s98 = sphi 0, %s95
      %s99 = sphi 0, %s98
      %s115 = sphi 0, %s99
    $region4: #{tpu_custom_call.1} parent=1 // loop_header_branch
      %20 = sbr.rel (%p18) target = $region8
    $region5: #{tpu_custom_call.1} parent=1 // loop_body
      %s22 = ssub.s32 %s17, 1
      %s23 = ssub.s32 %s17, 2
      %s30 = sadd.s32 1, %s25
      %p31 = scmp.ge.s32.totalorder %s30, 1
      %s32 = scalar_select %p31, 0, %s30
      %s33 = sadd.s32 1, %s24
      %s34 = scalar_select %p31, %s33, %s24
      %p35 = scmp.ge.s32.totalorder %s34, 2
      %s36 = scalar_select %p35, 0, %s34
      %s37 = ssub.s32 %s24, %s36
      %s38 = ssub.s32 %s25, %s32
      %s39 = sor.u32 %s37, %s38
      %p40 = scmp.eq.s32.totalorder %s39, 0
      %s42 = sadd.s32 %s41, 1
      %s43 = scalar_select %p40, %s41, %s42
      %p46 = pneg %p40
      %p47 = scmp.eq.s32.totalorder %s17, 1
      %p48 = por %p46, %p47
      %p49 = scmp.ne.s32.totalorder %s41, %s44
      %p50 = scmp.eq.s32.totalorder %s17, 0
      %p51 = por %p49, %p50
      %p52 = scmp.ne.s32.totalorder %s41, %s44
      %p53 = scmp.eq.s32.totalorder %s22, 1
      %p54 = por %p52, %p53
      %p55 = scmp.ne.s32.totalorder %s44, %s45
      %p56 = scmp.eq.s32.totalorder %s22, 0
      %p57 = por %p55, %p56
      %p58 = scmp.ne.s32.totalorder %s44, %s45
      %p59 = scmp.eq.s32.totalorder %s23, 1
      %p60 = por %p58, %p59
      %p62 = scmp.ne.s32.totalorder %s45, %s61
      %p63 = scmp.eq.s32.totalorder %s23, 0
      %p64 = por %p62, %p63
      %s65 = ssub.s32 %s24, %s36
      %s66 = ssub.s32 %s25, %s32
      %s67 = sor.u32 %s65, %s66
      %p68 = scmp.eq.s32.totalorder %s67, 0
      %s70 = sadd.s32 %s69, 1
      %s71 = scalar_select %p68, %s69, %s70
      %p74 = pneg %p68
      %p75 = scmp.eq.s32.totalorder %s17, 1
      %p76 = por %p74, %p75
      %p77 = scmp.ne.s32.totalorder %s69, %s72
      %p78 = scmp.eq.s32.totalorder %s17, 0
      %p79 = por %p77, %p78
      %p80 = scmp.ne.s32.totalorder %s69, %s72
      %p81 = scmp.eq.s32.totalorder %s22, 1
      %p82 = por %p80, %p81
      %p83 = scmp.ne.s32.totalorder %s72, %s73
      %p84 = scmp.eq.s32.totalorder %s22, 0
      %p85 = por %p83, %p84
      %p86 = scmp.ne.s32.totalorder %s72, %s73
      %p87 = scmp.eq.s32.totalorder %s23, 1
      %p88 = por %p86, %p87
      %p90 = scmp.ne.s32.totalorder %s73, %s89
      %p91 = scmp.eq.s32.totalorder %s23, 0
      %p92 = por %p90, %p91
      %s93 = ssub.s32 %s24, %s36
      %p94 = scmp.eq.s32.totalorder %s93, 0
      %s96 = sadd.s32 %s95, 1
      %s97 = scalar_select %p94, %s95, %s96
      %p100 = pneg %p94
      %p101 = scmp.eq.s32.totalorder %s17, 1
      %p102 = por %p100, %p101
      %p103 = scmp.ne.s32.totalorder %s95, %s98
      %p104 = scmp.eq.s32.totalorder %s17, 0
      %p105 = por %p103, %p104
      %p106 = scmp.ne.s32.totalorder %s95, %s98
      %p107 = scmp.eq.s32.totalorder %s22, 1
      %p108 = por %p106, %p107
      %p109 = scmp.ne.s32.totalorder %s98, %s99
      %p110 = scmp.eq.s32.totalorder %s22, 0
      %p111 = por %p109, %p110
      %p112 = scmp.ne.s32.totalorder %s98, %s99
      %p113 = scmp.eq.s32.totalorder %s23, 1
      %p114 = por %p112, %p113
      %p116 = scmp.ne.s32.totalorder %s99, %s115
      %p117 = scmp.eq.s32.totalorder %s23, 0
      %p118 = por %p116, %p117
      %p119 = scmp.le.s32.totalorder 1, %s17
      %p120 = scmp.lt.s32.totalorder %s17, 3
      %p121 = pnand %p119, %p120
      %p122 = pneg %p121
      // Predicated region
      $region9: #{tpu_custom_call.1} parent=5 // pred_check
        _
      $region10: #{tpu_custom_call.1} parent=5 // pred_check_branch
        %124 = sbr.rel (%p121) target = $region12
      $region11: #{tpu_custom_call.1} parent=5 // pred_region
        %s125 = ssub.s32 %s17, 1
      $region12: #{tpu_custom_call.1} parent=5 // pred_fallthru
        _
      %p126 = scmp.lt.s32.totalorder %s17, 2
      // Predicated region
      $region13: #{tpu_custom_call.1} parent=5 // pred_check
        %p127 = pneg %p126
      $region14: #{tpu_custom_call.1} parent=5 // pred_check_branch
        %129 = sbr.rel (%p127) target = $region16
      $region15: #{tpu_custom_call.1} parent=5 // pred_region
        // Predicated region
        $region17: #{tpu_custom_call.1} parent=15 // pred_check
          %p130 = pneg %p51
        $region18: #{tpu_custom_call.1} parent=15 // pred_check_branch
          %132 = sbr.rel (%p130) target = $region20
        $region19: #{tpu_custom_call.1} parent=15 // pred_region
          %s133 = sand.u32 %s41, 1
          %s134 = scalar_lea.sflag [#allocation4], %s133
          %s135 = sand.u32 %s41, 1
          %s136 = smul.addr %s135, 64
          %s137 = scalar_lea.vmem [#allocation3], %s136
          %s138 = smul.u32 2, %s25
          %140 = vsyncadd %s134, 0
          %s141 = smul.addr %s24, 8
          %s142 = sadd.s32 %s138, %s141
          %s143 = smul.addr %s142, 8
          %s144 = scalar_lea.hbm %s0, %s143
          %s145 = sshll.u32 %s144, 4
          %s146 = int_to_ptr.hbm [resolvable:$true] %s145
          %s147 = sshll.u32 %s137, 4
          %s148 = int_to_ptr.vmem [resolvable:$true] %s147
          %153 = dma.hbm_to_vmem [thread:$0]  %s146, 1024, %s148, %s134, 128, 128, 8
        $region20: #{tpu_custom_call.1} parent=15 // pred_fallthru
          _
        // Predicated region
        $region21: #{tpu_custom_call.1} parent=15 // pred_check
          %p154 = pneg %p79
        $region22: #{tpu_custom_call.1} parent=15 // pred_check_branch
          %156 = sbr.rel (%p154) target = $region24
        $region23: #{tpu_custom_call.1} parent=15 // pred_region
          %s157 = sand.u32 %s69, 1
          %s158 = scalar_lea.sflag [#allocation7], %s157
          %s159 = sand.u32 %s69, 1
          %s160 = smul.addr %s159, 64
          %s161 = scalar_lea.vmem [#allocation6], %s160
          %s162 = smul.u32 2, %s25
          %164 = vsyncadd %s158, 0
          %s165 = smul.addr %s24, 8
          %s166 = sadd.s32 %s162, %s165
          %s167 = smul.addr %s166, 8
          %s168 = scalar_lea.hbm %s1, %s167
          %s169 = sshll.u32 %s168, 4
          %s170 = int_to_ptr.hbm [resolvable:$true] %s169
          %s171 = sshll.u32 %s161, 4
          %s172 = int_to_ptr.vmem [resolvable:$true] %s171
          %177 = dma.hbm_to_vmem [thread:$0]  %s170, 1024, %s172, %s158, 128, 128, 8
        $region24: #{tpu_custom_call.1} parent=15 // pred_fallthru
          _
      $region16: #{tpu_custom_call.1} parent=5 // pred_fallthru
        _
      %p178 = scmp.le.s32.totalorder 1, %s17
      %p179 = scmp.lt.s32.totalorder %s17, 3
      %p180 = pnand %p178, %p179
      %p181 = pneg %p180
      // Predicated region
      $region25: #{tpu_custom_call.1} parent=5 // pred_check
        _
      $region26: #{tpu_custom_call.1} parent=5 // pred_check_branch
        %183 = sbr.rel (%p180) target = $region28
      $region27: #{tpu_custom_call.1} parent=5 // pred_region
        %s184 = ssub.s32 %s17, 1
        %s185 = sand.u32 %s44, 1
        %s186 = scalar_lea.sflag [#allocation4], %s185
        %s187 = sand.u32 %s44, 1
        %s188 = smul.addr %s187, 64
        %s189 = scalar_lea.vmem [#allocation3], %s188
        // Predicated region
        $region29: #{tpu_custom_call.1} parent=27 // pred_check
          %p190 = pneg %p57
        $region30: #{tpu_custom_call.1} parent=27 // pred_check_branch
          %192 = sbr.rel (%p190) target = $region32
        $region31: #{tpu_custom_call.1} parent=27 // pred_region
          %194 = dma.done %s186, 1024
        $region32: #{tpu_custom_call.1} parent=27 // pred_fallthru
          _
        %s195 = sand.u32 %s72, 1
        %s196 = scalar_lea.sflag [#allocation7], %s195
        %s197 = sand.u32 %s72, 1
        %s198 = smul.addr %s197, 64
        %s199 = scalar_lea.vmem [#allocation6], %s198
        // Predicated region
        $region33: #{tpu_custom_call.1} parent=27 // pred_check
          %p200 = pneg %p85
        $region34: #{tpu_custom_call.1} parent=27 // pred_check_branch
          %202 = sbr.rel (%p200) target = $region36
        $region35: #{tpu_custom_call.1} parent=27 // pred_region
          %204 = dma.done %s196, 1024
        $region36: #{tpu_custom_call.1} parent=27 // pred_fallthru
          _
        %s205 = sand.u32 %s44, 1
        %s206 = scalar_lea.sflag [#allocation4], %s205
        %s207 = sand.u32 %s44, 1
        %s208 = smul.addr %s207, 64
        %s209 = scalar_lea.vmem [#allocation3], %s208
        %p210 = pneg %p57
        %p211 = pneg %p54
        %s212 = sand.u32 %s72, 1
        %s213 = scalar_lea.sflag [#allocation7], %s212
        %s214 = sand.u32 %s72, 1
        %s215 = smul.addr %s214, 64
        %s216 = scalar_lea.vmem [#allocation6], %s215
        %p217 = pneg %p85
        %p218 = pneg %p82
        %p219 = pneg %p111
        %p220 = pneg %p108
        %s221 = sand.u32 %s98, 1
        %s222 = scalar_lea.sflag [#allocation5], %s221
        %s223 = sand.u32 %s98, 1
        %s224 = smul.addr %s223, 8
        %s225 = scalar_lea.vmem [#allocation8], %s224
        %s226 = smul.u32 2, %s27
        %s227 = smul.u32 2, %s27
        %v228 = vld [vmem:[%s199] sm:$0xff]
        %v229 = vld [vmem:[%s199 + $0x8] sm:$0xff]
        %v230 = vld [vmem:[%s199 + $0x10] sm:$0xff]
        %v231 = vld [vmem:[%s199 + $0x18] sm:$0xff]
        %v232 = vld [vmem:[%s199 + $0x20] sm:$0xff]
        %v233 = vld [vmem:[%s199 + $0x28] sm:$0xff]
        %v234 = vld [vmem:[%s199 + $0x30] sm:$0xff]
        %v235 = vld [vmem:[%s199 + $0x38] sm:$0xff]
        %v236 = vld [vmem:[%s189] sm:$0xff]
        %v237 = vld [vmem:[%s189 + $0x8] sm:$0xff]
        %v238 = vld [vmem:[%s189 + $0x10] sm:$0xff]
        %v239 = vld [vmem:[%s189 + $0x18] sm:$0xff]
        %v240 = vld [vmem:[%s189 + $0x20] sm:$0xff]
        %v241 = vld [vmem:[%s189 + $0x28] sm:$0xff]
        %v242 = vld [vmem:[%s189 + $0x30] sm:$0xff]
        %v243 = vld [vmem:[%s189 + $0x38] sm:$0xff]
        %v244 = vsub.f32 %v228, %v236
        %v245 = vsub.f32 %v229, %v237
        %v246 = vsub.f32 %v230, %v238
        %v247 = vsub.f32 %v231, %v239
        %v248 = vsub.f32 %v232, %v240
        %v249 = vsub.f32 %v233, %v241
        %v250 = vsub.f32 %v234, %v242
        %v251 = vsub.f32 %v235, %v243
        %vm252 = vcmask 130048
        %v253 = vsel %vm252, %v244, 0.0
        %v254 = vsel %vm252, %v246, 0.0
        %v255 = vadd.f32 %v253, %v254
        %v256 = vsel %vm252, %v248, 0.0
        %v257 = vadd.f32 %v255, %v256
        %v258 = vsel %vm252, %v250, 0.0
        %v259 = vadd.f32 %v257, %v258
        %v260 = vsel %vm252, %v245, 0.0
        %v261 = vsel %vm252, %v247, 0.0
        %v262 = vadd.f32 %v260, %v261
        %v263 = vsel %vm252, %v249, 0.0
        %v264 = vadd.f32 %v262, %v263
        %v265 = vsel %vm252, %v251, 0.0
        %v266 = vadd.f32 %v264, %v265
        %vm267 = vcmask 125952
        %v268 = vsel %vm267, %v259, 0.0
        %v269 = vrot.slane %v268, 4
        %v270 = vadd.f32 %v268, %v269
        %v271 = vrot.slane %v270, 2
        %v272 = vadd.f32 %v270, %v271
        %v273 = vrot.slane %v272, 1
        %v274 = vadd.f32 %v272, %v273
        %v276 = vrot.slane %v259, 4
        %v278 = vsel %vm267, %v276, 0.0
        %v279 = vrot.slane %v278, 4
        %v280 = vadd.f32 %v278, %v279
        %v281 = vrot.slane %v280, 2
        %v282 = vadd.f32 %v280, %v281
        %v283 = vrot.slane %v282, 1
        %v284 = vadd.f32 %v282, %v283
        %v285 = vsel %vm267, %v266, 0.0
        %v286 = vrot.slane %v285, 4
        %v287 = vadd.f32 %v285, %v286
        %v288 = vrot.slane %v287, 2
        %v289 = vadd.f32 %v287, %v288
        %v290 = vrot.slane %v289, 1
        %v291 = vadd.f32 %v289, %v290
        %v293 = vrot.slane %v266, 4
        %v295 = vsel %vm267, %v293, 0.0
        %v296 = vrot.slane %v295, 4
        %v297 = vadd.f32 %v295, %v296
        %v298 = vrot.slane %v297, 2
        %v299 = vadd.f32 %v297, %v298
        %v300 = vrot.slane %v299, 1
        %v301 = vadd.f32 %v299, %v300
        %vm302 = vcmask 1040384
        %v303 = vsel %vm302, %v274, %v284
        %vm304 = vcmask 1041408
        %v305 = vsel %vm304, %v303, %v291
        %vm306 = vcmask 1042432
        %v307 = vsel %vm306, %v305, %v301
        %s308 = smul.u32 %s27, 4
        %s309 = scalar_lea.vmem [#allocation2], %s308
        %310 = vst.msk [vmem:[%s309] sm:$0xf] %vm267, %v307
        %p311 = scmp.eq.s32.totalorder %s27, 0
        // Predicated region
        $region37: #{tpu_custom_call.1} parent=27 // pred_check
          %p312 = pneg %p311
        $region38: #{tpu_custom_call.1} parent=27 // pred_check_branch
          %314 = sbr.rel (%p312) target = $region40
        $region39: #{tpu_custom_call.1} parent=27 // pred_region
          %v315 = vld [vmem:[#allocation2] sm:$0xf]
          %317 = vrot.lane.b32.xlu0 %v315, 127
          %v318 = vpop.permute.xlu0 %317
          %vm320 = vcmask 121856
          %v321 = vsel %vm320, %v318, 0.0
          %v322 = vadd.f32 %v315, %v321
          %323 = vrot.lane.b32.xlu0 %v315, 126
          %v324 = vpop.permute.xlu0 %323
          %vm326 = vcmask 113664
          %v327 = vsel %vm326, %v324, 0.0
          %v328 = vadd.f32 %v322, %v327
          %329 = vrot.lane.b32.xlu0 %v315, 125
          %v330 = vpop.permute.xlu0 %329
          %vm332 = vcmask 105472
          %v333 = vsel %vm332, %v330, 0.0
          %v334 = vadd.f32 %v328, %v333
          %v335 = vlaneseq
          %v336 = vand.u32 %v335, 127
          %v337 = vand.u32 %v336, 3
          %vm338 = vcmp.eq.s32.totalorder %v337, 0
          %v339 = vsel %vm338, %v334, 0.0
          %v340 = vmul.f32 %v339, 0.015625
          %342 = vrot.lane.b32.xlu0 %v340, 4
          %v343 = vpop.permute.xlu0 %342
          %vm345 = vcmask 31744
          %v346 = vsel %vm345, 0.0, %v343
          %347 = vrot.lane.b32.xlu0 %v340, 124
          %v348 = vpop.permute.xlu0 %347
          %vm350 = vcmask 97280
          %v351 = vsel %vm350, %v348, 0.0
          %v352 = vrot.slane %v340, 7
          %v354 = vsel %vm302, 0.0, %v352
          %v355 = vrot.slane %v340, 1
          %v357 = vsel %vm306, %v355, 0.0
          %v358 = vsub.f32 %v340, %v346
          %v359 = vmul.f32 %v358, %v358
          %v360 = vsub.f32 %v340, %v351
          %v361 = vmul.f32 %v360, %v360
          %v362 = vadd.f32 %v359, %v361
          %v363 = vsub.f32 %v340, %v354
          %v364 = vmul.f32 %v363, %v363
          %v365 = vadd.f32 %v362, %v364
          %v366 = vsub.f32 %v340, %v357
          %v367 = vmul.f32 %v366, %v366
          %v368 = vadd.f32 %v365, %v367
          %v369 = vsel %vm267, %v368, 0.0
          %370 = vadd.xlane.f32.xlu0 %v369
          %v371 = vpop.xlane.xlu0 %370
          %v372 = vrot.slane %v371, 4
          %v373 = vadd.f32 %v371, %v372
          %v374 = vrot.slane %v373, 2
          %v375 = vadd.f32 %v373, %v374
          %v376 = vrot.slane %v375, 1
          %v377 = vadd.f32 %v375, %v376
          %s378 = vtos %v377
          %v379 = vstv %s378
          %380 = vst [vmem:[%s225] sm:$0xff] %v379
        $region40: #{tpu_custom_call.1} parent=27 // pred_fallthru
          _
        %s381 = sand.u32 %s98, 1
        %s382 = scalar_lea.sflag [#allocation5], %s381
        %s383 = sand.u32 %s98, 1
        %s384 = smul.addr %s383, 8
        %s385 = scalar_lea.vmem [#allocation8], %s384
        // Predicated region
        $region41: #{tpu_custom_call.1} parent=27 // pred_check
          %p386 = pneg %p108
        $region42: #{tpu_custom_call.1} parent=27 // pred_check_branch
          %388 = sbr.rel (%p386) target = $region44
        $region43: #{tpu_custom_call.1} parent=27 // pred_region
          %390 = vsyncadd %s382, 0
          %s391 = smul.addr %s26, 8
          %s392 = scalar_lea.hbm %s2, %s391
          %s394 = sshll.u32 %s385, 4
          %s395 = int_to_ptr.vmem [resolvable:$true] %s394
          %s396 = sshll.u32 %s392, 4
          %s397 = int_to_ptr.hbm [resolvable:$true] %s396
          %399 = dma.vmem_to_hbm [thread:$0]  %s395, 128, %s397, %s382
        $region44: #{tpu_custom_call.1} parent=27 // pred_fallthru
          _
      $region28: #{tpu_custom_call.1} parent=5 // pred_fallthru
        _
      %p400 = scmp.le.s32.totalorder 2, %s17
      // Predicated region
      $region45: #{tpu_custom_call.1} parent=5 // pred_check
        %p401 = pneg %p400
      $region46: #{tpu_custom_call.1} parent=5 // pred_check_branch
        %403 = sbr.rel (%p401) target = $region48
      $region47: #{tpu_custom_call.1} parent=5 // pred_region
        %s404 = ssub.s32 %s17, 2
        // Predicated region
        $region49: #{tpu_custom_call.1} parent=47 // pred_check
          %p405 = pneg %p114
        $region50: #{tpu_custom_call.1} parent=47 // pred_check_branch
          %407 = sbr.rel (%p405) target = $region52
        $region51: #{tpu_custom_call.1} parent=47 // pred_region
          %s408 = sand.u32 %s99, 1
          %s409 = scalar_lea.sflag [#allocation5], %s408
          %s410 = sand.u32 %s99, 1
          %s411 = smul.addr %s410, 8
          %s412 = scalar_lea.vmem [#allocation8], %s411
          %414 = dma.done %s409, 128
        $region52: #{tpu_custom_call.1} parent=47 // pred_fallthru
          _
      $region48: #{tpu_custom_call.1} parent=5 // pred_fallthru
        _
    $region6: #{tpu_custom_call.1} parent=1 // loop_footer
      %s21 = sadd.s32 1, %s17
    $region7: #{tpu_custom_call.1} parent=1 // loop_footer_branch
      %16 = sbr.rel target = $region3
    $region8: #{tpu_custom_call.1} parent=1 // loop_exit
      _
    %415 = vsyncpa [#allocation4], 1
    %s416 = scalar_lea.sflag [#allocation4], 1
    %417 = vsyncpa %s416, 1
    %418 = vsyncpa [#allocation7], 1
    %s419 = scalar_lea.sflag [#allocation7], 1
    %420 = vsyncpa %s419, 1
    %421 = vsyncpa [#allocation5], 1
    %s422 = scalar_lea.sflag [#allocation5], 1
    %423 = vsyncpa %s422, 1

</llo_original>
